<compile_context>
chip_gen: v5e
topology: v5e:2x2
jax: 0.10.0
libtpu: 0.0.40
codegen_flags: <defaults>
</compile_context>

<pallas_src>
import functools
import math

import jax
import jax.numpy as jnp
from jax import lax
from jax.experimental import pallas as pl
from jax.experimental.pallas import tpu as pltpu


# ---------------------------------------------------------------------------
# Stage 1: all four 1x1 BasicConv2d branches fused into ONE kernel.
# ---------------------------------------------------------------------------
def _stage1_kernel(x_ref, p_ref, w_ref, b_ref, o_ref, *, band, W):
    """x_ref/p_ref: (1, band, W, Cin) f32; w_ref: (2*Cin, 4*Cout) compute dtype;
    b_ref: (1, 4*Cout) f32; o_ref: (1, band, W, 4*Cout) f32."""
    z = jnp.concatenate([x_ref[0], p_ref[0]], axis=-1)        # (band, W, 2*Cin)
    z = z.reshape(band * W, z.shape[-1]).astype(w_ref.dtype)  # MXU operands in
                                                              # compute dtype
    acc = jnp.dot(z, w_ref[...], preferred_element_type=jnp.float32)
    out = jnp.maximum(acc + b_ref[...], 0.0)                  # f32 shift/bias + ReLU
    o_ref[0] = out.reshape(band, W, -1).astype(o_ref.dtype)


def _fold_1x1(gamma, beta, w_oihw, bias, mean, var, eps):
    """Fold training-mode BN (batch stats mean/var) into a 1x1 conv.

    Returns (w_folded (Cin, Cout), bias_vec (Cout,)) so that
      relu(conv1x1(BN(x))) == relu(x @ w_folded + bias_vec).
    """
    scale = gamma * lax.rsqrt(var + eps)             # (Cin,)
    shift = beta - mean * scale                      # (Cin,)
    w2d = w_oihw[:, :, 0, 0]                         # (Cout, Cin)
    w_folded = (w2d * scale[None, :]).T              # scale folded into weights
    bias_vec = w2d @ shift + bias                    # shift + conv bias, kept f32
    return w_folded, bias_vec


def fused_1x1_stage(x, p, params, *, eps=1e-5, compute_dtype=jnp.float32):
    """relu(conv1x1(BN(.))) for [branch1x1, branch3x3_1, branch5x5_1] on x and
    branch_pool on p = maxpool3x3(x), all in one pallas_call.

    Output channel layout: [b1 | b3_mid | b5_mid | bpool], each Cout wide."""
    N, H, W, Cin = x.shape

    # Tiny XLA reductions for the training-mode batch statistics.
    mean_x, var_x = jnp.mean(x, axis=(0, 1, 2)), jnp.var(x, axis=(0, 1, 2))
    mean_p, var_p = jnp.mean(p, axis=(0, 1, 2)), jnp.var(p, axis=(0, 1, 2))

    w1, b1 = _fold_1x1(*params["branch1x1"], mean_x, var_x, eps)
    w31, b31 = _fold_1x1(*params["branch3x3_1"], mean_x, var_x, eps)
    w51, b51 = _fold_1x1(*params["branch5x5_1"], mean_x, var_x, eps)
    wp, bp = _fold_1x1(*params["branch_pool"], mean_p, var_p, eps)
    Cout = b1.shape[0]

    # Block-diagonal combined weight: rows = [x | p], cols = [b1 b3 b5 bpool].
    wx = jnp.concatenate([w1, w31, w51], axis=1)                         # (Cin, 3C)
    top = jnp.concatenate([wx, jnp.zeros((Cin, Cout), wx.dtype)], axis=1)
    bot = jnp.concatenate([jnp.zeros((Cin, 3 * Cout), wp.dtype), wp], axis=1)
    w_all = jnp.concatenate([top, bot], axis=0).astype(compute_dtype)    # (2Cin, 4C)
    bias_all = jnp.concatenate([b1, b31, b51, bp]).reshape(1, 4 * Cout)
    bias_all = bias_all.astype(jnp.float32)

    band = 8 if H % 8 == 0 else H                  # row-band for pipeline depth
    grid = (N, H // band)
    kernel = functools.partial(_stage1_kernel, band=band, W=W)

    return pl.pallas_call(
        kernel,
        out_shape=jax.ShapeDtypeStruct((N, H, W, 4 * Cout), jnp.float32),
        grid=grid,
        in_specs=[
            pl.BlockSpec((1, band, W, Cin), lambda n, r: (n, r, 0, 0)),
            pl.BlockSpec((1, band, W, Cin), lambda n, r: (n, r, 0, 0)),
            pl.BlockSpec((2 * Cin, 4 * Cout), lambda n, r: (0, 0)),
            pl.BlockSpec((1, 4 * Cout), lambda n, r: (0, 0)),
        ],
        out_specs=pl.BlockSpec((1, band, W, 4 * Cout), lambda n, r: (n, r, 0, 0)),
        compiler_params=pltpu.CompilerParams(
            dimension_semantics=("parallel", "parallel")),
    )(x, p, w_all, bias_all)


# ---------------------------------------------------------------------------
# Stage 2: BasicConv2d with K>1 — BN + 'same' halo + conv + bias + ReLU fused.
# ---------------------------------------------------------------------------
def _conv_bn_relu_kernel(x_ref, scale_ref, shift_ref, w_ref, b_ref, o_ref,
                         xpad_ref, *, H, W, KH, KW, Cin, per_tap):
    """x_ref: (1, H, W, Cin) f32 raw activations.
    scale_ref/shift_ref: (1, 1, Cin) f32 BN affine (batch stats pre-folded).
    w_ref: (KH*KW*Cin, Cout) compute dtype; b_ref: (1, Cout) f32 conv bias.
    o_ref: (1, H, W, Cout) f32; xpad_ref: VMEM (H+KH-1, W+KW-1, Cin) f32."""
    ph0, pw0 = (KH - 1) // 2, (KW - 1) // 2
    Cout = o_ref.shape[-1]

    # 'same' halo must be exactly 0 in normalized space: zero the padded
    # scratch, then write the normalized (f32) tile into its interior.
    xpad_ref[...] = jnp.zeros_like(xpad_ref)
    scl = scale_ref[...]                                          # (1, 1, Cin)
    sft = shift_ref[...]
    xpad_ref[ph0:ph0 + H, pw0:pw0 + W, :] = x_ref[0] * scl + sft

    # Cast ONCE, so the patch / per-tap slices are built in compute dtype.
    xp = xpad_ref[...].astype(w_ref.dtype)                        # (Hp, Wp, Cin)

    if per_tap:
        # Per-tap accumulation: keeps only the padded tile resident (no KH*KW x
        # im2col blow-up in VMEM at large feature maps / channel counts).
        acc = jnp.zeros((H * W, Cout), jnp.float32)
        for tap_idx in range(KH * KW):
            kh, kw = tap_idx // KW, tap_idx % KW
            tap = xp[kh:kh + H, kw:kw + W, :].reshape(H * W, Cin)
            acc = acc + jnp.dot(tap, w_ref[tap_idx * Cin:(tap_idx + 1) * Cin, :],
                                preferred_element_type=jnp.float32)
    else:
        # Single im2col matmul: lane order (kh, kw, cin) matches the weight rows.
        cols = [xp[kh:kh + H, kw:kw + W, :]
                for kh in range(KH) for kw in range(KW)]
        patch = cols[0] if len(cols) == 1 else jnp.concatenate(cols, axis=-1)
        patch = patch.reshape(H * W, KH * KW * Cin)
        acc = jnp.dot(patch, w_ref[...], preferred_element_type=jnp.float32)

    out = jnp.maximum(acc + b_ref[...], 0.0)                      # f32 bias + ReLU
    o_ref[0] = out.reshape(H, W, Cout).astype(o_ref.dtype)


def conv_bn_relu(x, gamma, beta, w_oihw, bias, *, eps=1e-5,
                 compute_dtype=jnp.float32):
    """relu(conv2d(batchnorm(x), padding='same') + bias) on an NHWC tensor."""
    N, H, W, Cin = x.shape
    Cout, Cin_w, KH, KW = w_oihw.shape
    assert Cin_w == Cin

    # Training-mode BatchNorm2d: biased batch statistics over (N, H, W).
    mean = jnp.mean(x, axis=(0, 1, 2))
    var = jnp.var(x, axis=(0, 1, 2))
    scale = gamma * lax.rsqrt(var + eps)
    shift = beta - mean * scale
    scale = scale.reshape(1, 1, Cin).astype(jnp.float32)
    shift = shift.reshape(1, 1, Cin).astype(jnp.float32)

    kdim = KH * KW * Cin                        # multiple of 8 for Cin % 8 == 0
    w2d = jnp.transpose(w_oihw, (2, 3, 1, 0)).reshape(kdim, Cout)
    w2d = w2d.astype(compute_dtype)
    bias2 = bias.reshape(1, Cout).astype(jnp.float32)

    per_tap = (KH * KW > 9)                     # 5x5+: avoid 25x im2col temp
    Hp, Wp = H + KH - 1, W + KW - 1
    kernel = functools.partial(_conv_bn_relu_kernel, H=H, W=W, KH=KH, KW=KW,
                               Cin=Cin, per_tap=per_tap)

    return pl.pallas_call(
        kernel,
        out_shape=jax.ShapeDtypeStruct((N, H, W, Cout), jnp.float32),
        grid=(N,),
        in_specs=[
            pl.BlockSpec((1, H, W, Cin), lambda n: (n, 0, 0, 0)),
            pl.BlockSpec((1, 1, Cin), lambda n: (0, 0, 0)),
            pl.BlockSpec((1, 1, Cin), lambda n: (0, 0, 0)),
            pl.BlockSpec((kdim, Cout), lambda n: (0, 0)),
            pl.BlockSpec((1, Cout), lambda n: (0, 0)),
        ],
        out_specs=pl.BlockSpec((1, H, W, Cout), lambda n: (n, 0, 0, 0)),
        scratch_shapes=[pltpu.VMEM((Hp, Wp, Cin), jnp.float32)],
        compiler_params=pltpu.CompilerParams(dimension_semantics=("parallel",)),
    )(x, scale, shift, w2d, bias2)


# ---------------------------------------------------------------------------
# max_pool2d(kernel_size=3, stride=1, padding=1) kernel (NHWC), halo in-kernel.
# ---------------------------------------------------------------------------
def _max_pool3x3_kernel(x_ref, o_ref, pad_ref, *, H, W, neg):
    pad_ref[...] = jnp.full(pad_ref.shape, neg, pad_ref.dtype)
    pad_ref[1:1 + H, 1:1 + W, :] = x_ref[0]
    xp = pad_ref[...]                                   # (H+2, W+2, C)
    m = xp[0:H, 0:W, :]
    for kh in range(3):
        for kw in range(3):
            if kh or kw:
                m = jnp.maximum(m, xp[kh:kh + H, kw:kw + W, :])
    o_ref[0] = m


def max_pool_3x3_same(x):
    N, H, W, C = x.shape
    # NOTE: dtype.min halo (vs -inf) is identical for finite inputs.
    neg = float(jnp.finfo(x.dtype).min)
    kernel = functools.partial(_max_pool3x3_kernel, H=H, W=W, neg=neg)
    return pl.pallas_call(
        kernel,
        out_shape=jax.ShapeDtypeStruct((N, H, W, C), x.dtype),
        grid=(N,),
        in_specs=[pl.BlockSpec((1, H, W, C), lambda n: (n, 0, 0, 0))],
        out_specs=pl.BlockSpec((1, H, W, C), lambda n: (n, 0, 0, 0)),
        scratch_shapes=[pltpu.VMEM((H + 2, W + 2, C), x.dtype)],
        compiler_params=pltpu.CompilerParams(dimension_semantics=("parallel",)),
    )(x)


# ---------------------------------------------------------------------------
# Inception forward (NCHW in / NCHW out, NHWC inside).
# ---------------------------------------------------------------------------
def inception_forward(x_nchw, params, *, eps=1e-5, compute_dtype=jnp.float32):
    x = jnp.transpose(x_nchw, (0, 2, 3, 1))           # single NCHW -> NHWC
    p = max_pool_3x3_same(x)

    # Stage 1: branch1x1 / branch3x3_1 / branch5x5_1 / branch_pool in one call.
    y = fused_1x1_stage(x, p, params, eps=eps, compute_dtype=compute_dtype)
    Cout = params["branch1x1"][3].shape[0]
    b1 = y[..., 0 * Cout:1 * Cout]
    y31 = y[..., 1 * Cout:2 * Cout]
    y51 = y[..., 2 * Cout:3 * Cout]
    bpool = y[..., 3 * Cout:4 * Cout]

    # Stage 2: the KxK second convs of the 3x3 and 5x5 branches.
    b3 = conv_bn_relu(y31, *params["branch3x3_2"], eps=eps,
                      compute_dtype=compute_dtype)
    b5 = conv_bn_relu(y51, *params["branch5x5_2"], eps=eps,
                      compute_dtype=compute_dtype)

    out = jnp.concatenate([b1, b5, b3, bpool], axis=-1)   # PyTorch cat order
    return jnp.transpose(out, (0, 3, 1, 2))               # single NHWC -> NCHW


# ---------------------------------------------------------------------------
# Pure-JAX reference matching the PyTorch module (training-mode BN).
# ---------------------------------------------------------------------------
def _basic_conv2d_ref(x, gamma, beta, w_oihw, bias, eps=1e-5):
    mean = jnp.mean(x, axis=(0, 2, 3), keepdims=True)
    var = jnp.var(x, axis=(0, 2, 3), keepdims=True)
    xh = (x - mean) * lax.rsqrt(var + eps)
    xh = xh * gamma[None, :, None, None] + beta[None, :, None, None]
    KH, KW = w_oihw.shape[2], w_oihw.shape[3]
    pad = (((KH - 1) // 2, KH // 2), ((KW - 1) // 2, KW // 2))
    y = lax.conv_general_dilated(
        xh, w_oihw, window_strides=(1, 1), padding=pad,
        dimension_numbers=("NCHW", "OIHW", "NCHW"),
        precision=lax.Precision.HIGHEST)
    return jnp.maximum(y + bias[None, :, None, None], 0.0)


def _inception_ref(x, params, eps=1e-5):
    b1 = _basic_conv2d_ref(x, *params["branch1x1"], eps=eps)
    b3 = _basic_conv2d_ref(x, *params["branch3x3_1"], eps=eps)
    b3 = _basic_conv2d_ref(b3, *params["branch3x3_2"], eps=eps)
    b5 = _basic_conv2d_ref(x, *params["branch5x5_1"], eps=eps)
    b5 = _basic_conv2d_ref(b5, *params["branch5x5_2"], eps=eps)
    bp = lax.reduce_window(x, jnp.array(-jnp.inf, x.dtype), lax.max,
                           (1, 1, 3, 3), (1, 1, 1, 1),
                           padding=((0, 0), (0, 0), (1, 1), (1, 1)))
    bp = _basic_conv2d_ref(bp, *params["branch_pool"], eps=eps)
    return jnp.concatenate([b1, b5, b3, bp], axis=1)


def _make_basic_conv_params(key, cin, cout, k):
    kw_key, kb_key, kg_key, kbeta_key = jax.random.split(key, 4)
    bound = 1.0 / math.sqrt(cin * k * k)
    w = jax.random.uniform(kw_key, (cout, cin, k, k), jnp.float32, -bound, bound)
    b = jax.random.uniform(kb_key, (cout,), jnp.float32, -bound, bound)
    # Non-trivial BN affine params to exercise the scale/shift folding and the
    # 'same'-padding border handling.
    gamma = jax.random.uniform(kg_key, (cin,), jnp.float32, 0.5, 1.5)
    beta = jax.random.uniform(kbeta_key, (cin,), jnp.float32, -0.5, 0.5)
    return (gamma, beta, w, b)


if __name__ == "__main__":
    key = jax.random.PRNGKey(0)
    kx, *pkeys = jax.random.split(key, 7)

    N, CIN, H, W = 2, 4, 16, 16
    COUT = 8

    x = jax.random.normal(kx, (N, CIN, H, W), dtype=jnp.float32)
    cfg = {
        "branch1x1":   (CIN,  COUT, 1),
        "branch3x3_1": (CIN,  COUT, 1),
        "branch3x3_2": (COUT, COUT, 3),
        "branch5x5_1": (CIN,  COUT, 1),
        "branch5x5_2": (COUT, COUT, 5),
        "branch_pool": (CIN,  COUT, 1),
    }
    params = {name: _make_basic_conv_params(k, *c)
              for (name, c), k in zip(cfg.items(), pkeys)}

    ref = _inception_ref(x, params)

    # f32 compute path.
    out = jax.block_until_ready(inception_forward(x, params))
    assert out.shape == (N, 4 * COUT, H, W)
    err = float(jnp.max(jnp.abs(out - ref)))
    assert jnp.allclose(out, ref, atol=3e-2, rtol=3e-2), \
        f"f32 mismatch vs reference (max abs err = {err})"

    # bf16 MXU-operand path with f32 accumulation and f32 shift/bias.
    out_bf16 = jax.block_until_ready(
        inception_forward(x, params, compute_dtype=jnp.bfloat16))
    err_bf16 = float(jnp.max(jnp.abs(out_bf16 - ref)))
    assert jnp.allclose(out_bf16, ref, atol=1e-1, rtol=1e-1), \
        f"bf16 mismatch vs reference (max abs err = {err_bf16})"

    print("KERNEL_OK")
</pallas_src>

<mosaic_0001>
module attributes {stable_mosaic.version = 11 : i64} {
  func.func @_max_pool3x3_kernel(%arg0: i32, %arg1: memref<1x16x16x4xf32, #tpu.memory_space<vmem>>, %arg2: memref<1x16x16x4xf32, #tpu.memory_space<vmem>>, %arg3: memref<18x18x4xf32, #tpu.memory_space<vmem>>) attributes {dimension_semantics = [#tpu.dimension_semantics<parallel>], iteration_bounds = array<i64: 2>, scalar_prefetch = 0 : i64, scratch_operands = 1 : i64, tpu.core_type = #tpu.core_type<tc>, window_params = [{transform_indices = @transform_0, window_bounds = array<i64: 1, 16, 16, 4>}, {transform_indices = @transform_1, window_bounds = array<i64: 1, 16, 16, 4>}]} {
    %cst = arith.constant -3.40282347E+38 : f32
    %0 = vector.broadcast %cst : f32 to vector<18x18x4xf32>
    %c0 = arith.constant 0 : index
    %c0_0 = arith.constant 0 : index
    %c0_1 = arith.constant 0 : index
    %1 = vector.load %arg3[%c0, %c0_0, %c0_1] : memref<18x18x4xf32, #tpu.memory_space<vmem>>, vector<18x18x4xf32>
    tpu.vector_store %arg3[%c0, %c0_0, %c0_1], %0 {strides = array<i32>} : memref<18x18x4xf32, #tpu.memory_space<vmem>>, vector<18x18x4xf32>,
    %c0_2 = arith.constant 0 : index
    %c0_3 = arith.constant 0 : index
    %c0_4 = arith.constant 0 : index
    %c0_5 = arith.constant 0 : index
    %2 = vector.load %arg1[%c0_2, %c0_3, %c0_4, %c0_5] : memref<1x16x16x4xf32, #tpu.memory_space<vmem>>, vector<1x16x16x4xf32>
    %3 = vector.shape_cast %2 : vector<1x16x16x4xf32> to vector<16x16x4xf32>
    %c1 = arith.constant 1 : index
    %c1_6 = arith.constant 1 : index
    %c0_7 = arith.constant 0 : index
    %4 = vector.load %arg3[%c1, %c1_6, %c0_7] : memref<18x18x4xf32, #tpu.memory_space<vmem>>, vector<16x16x4xf32>
    tpu.vector_store %arg3[%c1, %c1_6, %c0_7], %3 {strides = array<i32>} : memref<18x18x4xf32, #tpu.memory_space<vmem>>, vector<16x16x4xf32>,
    %c0_8 = arith.constant 0 : index
    %c0_9 = arith.constant 0 : index
    %c0_10 = arith.constant 0 : index
    %5 = vector.load %arg3[%c0_8, %c0_9, %c0_10] : memref<18x18x4xf32, #tpu.memory_space<vmem>>, vector<18x18x4xf32>
    %6 = vector.extract_strided_slice %5 {offsets = [0, 0, 0], sizes = [16, 16, 4], strides = [1, 1, 1]} : vector<18x18x4xf32> to vector<16x16x4xf32>
    %7 = vector.extract_strided_slice %5 {offsets = [0, 1, 0], sizes = [16, 16, 4], strides = [1, 1, 1]} : vector<18x18x4xf32> to vector<16x16x4xf32>
    %8 = arith.maximumf %6, %7 : vector<16x16x4xf32>
    %9 = vector.extract_strided_slice %5 {offsets = [0, 2, 0], sizes = [16, 16, 4], strides = [1, 1, 1]} : vector<18x18x4xf32> to vector<16x16x4xf32>
    %10 = arith.maximumf %8, %9 : vector<16x16x4xf32>
    %11 = vector.extract_strided_slice %5 {offsets = [1, 0, 0], sizes = [16, 16, 4], strides = [1, 1, 1]} : vector<18x18x4xf32> to vector<16x16x4xf32>
    %12 = arith.maximumf %10, %11 : vector<16x16x4xf32>
    %13 = vector.extract_strided_slice %5 {offsets = [1, 1, 0], sizes = [16, 16, 4], strides = [1, 1, 1]} : vector<18x18x4xf32> to vector<16x16x4xf32>
    %14 = arith.maximumf %12, %13 : vector<16x16x4xf32>
    %15 = vector.extract_strided_slice %5 {offsets = [1, 2, 0], sizes = [16, 16, 4], strides = [1, 1, 1]} : vector<18x18x4xf32> to vector<16x16x4xf32>
    %16 = arith.maximumf %14, %15 : vector<16x16x4xf32>
    %17 = vector.extract_strided_slice %5 {offsets = [2, 0, 0], sizes = [16, 16, 4], strides = [1, 1, 1]} : vector<18x18x4xf32> to vector<16x16x4xf32>
    %18 = arith.maximumf %16, %17 : vector<16x16x4xf32>
    %19 = vector.extract_strided_slice %5 {offsets = [2, 1, 0], sizes = [16, 16, 4], strides = [1, 1, 1]} : vector<18x18x4xf32> to vector<16x16x4xf32>
    %20 = arith.maximumf %18, %19 : vector<16x16x4xf32>
    %21 = vector.extract_strided_slice %5 {offsets = [2, 2, 0], sizes = [16, 16, 4], strides = [1, 1, 1]} : vector<18x18x4xf32> to vector<16x16x4xf32>
    %22 = arith.maximumf %20, %21 : vector<16x16x4xf32>
    %c0_11 = arith.constant 0 : index
    %c0_12 = arith.constant 0 : index
    %c0_13 = arith.constant 0 : index
    %c0_14 = arith.constant 0 : index
    %23 = vector.load %arg2[%c0_11, %c0_12, %c0_13, %c0_14] : memref<1x16x16x4xf32, #tpu.memory_space<vmem>>, vector<1x16x16x4xf32>
    %24 = vector.shape_cast %23 : vector<1x16x16x4xf32> to vector<16x16x4xf32>
    %25 = vector.shape_cast %22 : vector<16x16x4xf32> to vector<1x16x16x4xf32>
    tpu.vector_store %arg2[%c0_11, %c0_12, %c0_13, %c0_14], %25 {strides = array<i32>} : memref<1x16x16x4xf32, #tpu.memory_space<vmem>>, vector<1x16x16x4xf32>,
    return
  }
  func.func @transform_0(%arg0: i32) -> (i32, i32, i32, i32) {
    %c0_i32 = arith.constant 0 : i32
    %c0_i32_0 = arith.constant 0 : i32
    %c0_i32_1 = arith.constant 0 : i32
    %c0_i32_2 = arith.constant 0 : i32
    return %arg0, %c0_i32, %c0_i32_0, %c0_i32_1 : i32, i32, i32, i32
  }
  func.func @transform_1(%arg0: i32) -> (i32, i32, i32, i32) {
    %c0_i32 = arith.constant 0 : i32
    %c0_i32_0 = arith.constant 0 : i32
    %c0_i32_1 = arith.constant 0 : i32
    %c0_i32_2 = arith.constant 0 : i32
    return %arg0, %c0_i32, %c0_i32_0, %c0_i32_1 : i32, i32, i32, i32
  }
}

</mosaic_0001>

<llo_original>
// kernel: tpu_custom_call.1
$region0: #{tpu_custom_call.1}
  #allocation0 [shape = 'u32[]', space=smem, size = 0x4, offset = 0x4, fixed_abs, tag = 'smem constant byte address 0x4 - core index']
  #allocation1 [shape = 'u32[72,128]{1,0:T(1,128)}', space=vmem, size = 0x9000, scoped, tag = 'internal scratch']
  #allocation2 [shape = 'f32[18,18,4]{2,1,0:T(8,128)}', space=vmem, size = 0x36000, scoped, tag = 'scratch operand']
  %s0 = inlined_call_operand.vmem [shape: f32[2,16,16,4], index: 0, kind: input, shape index: {}]
  %s1 = inlined_call_operand.vmem [shape: f32[2,16,16,4], index: 1, kind: output, shape index: {}]
  %s2 = sld [smem:[#allocation0]]
  $region37: #{tpu_custom_call.1} parent=0
    _
  %s4 = ssub.s32 1, %s2
  %s5 = scalar_select 0, %s4, %s2
  loop: start=0, step=1, limit=4
  $region2: #{tpu_custom_call.1} parent=0 // loop_pre_header
    _
  $region3: #{tpu_custom_call.1} parent=0 // loop_header
    %s7 = sphi 0, %s11
    %p8 = scmp.ge.s32.totalorder %s7, 4
    %s17 = sphi 0, %s19
    %s20 = sphi 0, %s17
    %s21 = sphi 0, %s20
    %s37 = sphi 0, %s21
    %s43 = sphi 0, %s45
    %s46 = sphi 0, %s43
    %s47 = sphi 0, %s46
    %s63 = sphi 0, %s47
  $region4: #{tpu_custom_call.1} parent=0 // loop_header_branch
    %10 = sbr.rel (%p8) target = $region8
  $region5: #{tpu_custom_call.1} parent=0 // loop_body
    %s12 = ssub.s32 %s7, 1
    %s13 = ssub.s32 %s7, 2
    %s14 = sadd.s32 %s7, 1
    %s15 = ssub.s32 %s7, %s14
    %p16 = scmp.eq.s32.totalorder %s15, 0
    %s18 = sadd.s32 %s17, 1
    %s19 = scalar_select %p16, %s17, %s18
    %p22 = pneg %p16
    %p23 = scmp.eq.s32.totalorder %s7, 1
    %p24 = por %p22, %p23
    %p25 = scmp.ne.s32.totalorder %s17, %s20
    %p26 = scmp.eq.s32.totalorder %s7, 0
    %p27 = por %p25, %p26
    %p28 = scmp.ne.s32.totalorder %s17, %s20
    %p29 = scmp.eq.s32.totalorder %s12, 1
    %p30 = por %p28, %p29
    %p31 = scmp.ne.s32.totalorder %s20, %s21
    %p32 = scmp.eq.s32.totalorder %s12, 0
    %p33 = por %p31, %p32
    %p34 = scmp.ne.s32.totalorder %s20, %s21
    %p35 = scmp.eq.s32.totalorder %s13, 1
    %p36 = por %p34, %p35
    %p38 = scmp.ne.s32.totalorder %s21, %s37
    %p39 = scmp.eq.s32.totalorder %s13, 0
    %p40 = por %p38, %p39
    %s41 = ssub.s32 %s7, %s14
    %p42 = scmp.eq.s32.totalorder %s41, 0
    %s44 = sadd.s32 %s43, 1
    %s45 = scalar_select %p42, %s43, %s44
    %p48 = pneg %p42
    %p49 = scmp.eq.s32.totalorder %s7, 1
    %p50 = por %p48, %p49
    %p51 = scmp.ne.s32.totalorder %s43, %s46
    %p52 = scmp.eq.s32.totalorder %s7, 0
    %p53 = por %p51, %p52
    %p54 = scmp.ne.s32.totalorder %s43, %s46
    %p55 = scmp.eq.s32.totalorder %s12, 1
    %p56 = por %p54, %p55
    %p57 = scmp.ne.s32.totalorder %s46, %s47
    %p58 = scmp.eq.s32.totalorder %s12, 0
    %p59 = por %p57, %p58
    %p60 = scmp.ne.s32.totalorder %s46, %s47
    %p61 = scmp.eq.s32.totalorder %s13, 1
    %p62 = por %p60, %p61
    %p64 = scmp.ne.s32.totalorder %s47, %s63
    %p65 = scmp.eq.s32.totalorder %s13, 0
    %p66 = por %p64, %p65
    %p67 = scmp.le.s32.totalorder 1, %s7
    %p68 = scmp.lt.s32.totalorder %s7, 3
    %p69 = pnand %p67, %p68
    %p70 = pneg %p69
    // Predicated region
    $region9: #{tpu_custom_call.1} parent=5 // pred_check
      _
    $region10: #{tpu_custom_call.1} parent=5 // pred_check_branch
      %72 = sbr.rel (%p69) target = $region12
    $region11: #{tpu_custom_call.1} parent=5 // pred_region
      %s73 = ssub.s32 %s7, 1
    $region12: #{tpu_custom_call.1} parent=5 // pred_fallthru
      _
    %p74 = scmp.lt.s32.totalorder %s7, 2
    // Predicated region
    $region13: #{tpu_custom_call.1} parent=5 // pred_check
      %p75 = pneg %p74
    $region14: #{tpu_custom_call.1} parent=5 // pred_check_branch
      %77 = sbr.rel (%p75) target = $region16
    $region15: #{tpu_custom_call.1} parent=5 // pred_region
      // Predicated region
      $region17: #{tpu_custom_call.1} parent=15 // pred_check
        %p78 = pneg %p27
      $region18: #{tpu_custom_call.1} parent=15 // pred_check_branch
        %80 = sbr.rel (%p78) target = $region20
      $region19: #{tpu_custom_call.1} parent=15 // pred_region
        %p81 = scmp.lt.s32.totalorder %s7, 1
        %s82 = scalar_select %p81, %s7, 1
        %s83 = smul.addr %s82, 32
        %s84 = smul.addr %s83, 8
        %s85 = scalar_lea.vmem %s0, %s84
      $region20: #{tpu_custom_call.1} parent=15 // pred_fallthru
        _
    $region16: #{tpu_custom_call.1} parent=5 // pred_fallthru
      _
    %p86 = scmp.le.s32.totalorder 1, %s7
    %p87 = scmp.lt.s32.totalorder %s7, 3
    %p88 = pnand %p86, %p87
    %p89 = pneg %p88
    // Predicated region
    $region21: #{tpu_custom_call.1} parent=5 // pred_check
      _
    $region22: #{tpu_custom_call.1} parent=5 // pred_check_branch
      %91 = sbr.rel (%p88) target = $region24
    $region23: #{tpu_custom_call.1} parent=5 // pred_region
      %s92 = ssub.s32 %s7, 1
      %p93 = scmp.lt.s32.totalorder %s12, 1
      %s94 = scalar_select %p93, %s12, 1
      %s95 = smul.addr %s94, 32
      %s96 = smul.addr %s95, 8
      %s97 = scalar_lea.vmem %s0, %s96
      %p98 = pneg %p33
      %p99 = pneg %p30
      %p100 = pneg %p59
      %p101 = pneg %p56
      %p102 = scmp.lt.s32.totalorder %s12, 1
      %s103 = scalar_select %p102, %s12, 1
      %s104 = smul.addr %s103, 32
      %s105 = smul.addr %s104, 8
      %s106 = scalar_lea.vmem %s1, %s105
      %p107 = scmp.lt.s32.totalorder %s12, 1
      %s108 = scalar_select %p107, %s12, 1
      %s109 = smul.addr %s108, 32
      %s110 = smul.addr %s109, 8
      %s111 = scalar_lea.vmem %s0, %s110
      %p112 = scmp.lt.s32.totalorder %s12, 1
      %s113 = scalar_select %p112, %s12, 1
      %s114 = smul.addr %s113, 32
      %s115 = smul.addr %s114, 8
      %s116 = scalar_lea.vmem %s1, %s115
      %vm117 = vcmask 31744
      %118 = vst.msk [vmem:[#allocation2] sm:$0xff] %vm117, -3.4028235e+38
      %119 = vst.msk [vmem:[#allocation2 + $0x8] sm:$0xff] %vm117, -3.4028235e+38
      %vm120 = vcmask 25600
      %121 = vst.msk [vmem:[#allocation2 + $0x10] sm:$0x3] %vm120, -3.4028235e+38
      %122 = vst.msk [vmem:[#allocation2 + $0x18] sm:$0xff] %vm117, -3.4028235e+38
      %123 = vst.msk [vmem:[#allocation2 + $0x20] sm:$0xff] %vm117, -3.4028235e+38
      %124 = vst.msk [vmem:[#allocation2 + $0x28] sm:$0x3] %vm120, -3.4028235e+38
      %125 = vst.msk [vmem:[#allocation2 + $0x30] sm:$0xff] %vm117, -3.4028235e+38
      %126 = vst.msk [vmem:[#allocation2 + $0x38] sm:$0xff] %vm117, -3.4028235e+38
      %127 = vst.msk [vmem:[#allocation2 + $0x40] sm:$0x3] %vm120, -3.4028235e+38
      %128 = vst.msk [vmem:[#allocation2 + $0x48] sm:$0xff] %vm117, -3.4028235e+38
      %129 = vst.msk [vmem:[#allocation2 + $0x50] sm:$0xff] %vm117, -3.4028235e+38
      %130 = vst.msk [vmem:[#allocation2 + $0x58] sm:$0x3] %vm120, -3.4028235e+38
      %131 = vst.msk [vmem:[#allocation2 + $0x60] sm:$0xff] %vm117, -3.4028235e+38
      %132 = vst.msk [vmem:[#allocation2 + $0x68] sm:$0xff] %vm117, -3.4028235e+38
      %133 = vst.msk [vmem:[#allocation2 + $0x70] sm:$0x3] %vm120, -3.4028235e+38
      %134 = vst.msk [vmem:[#allocation2 + $0x78] sm:$0xff] %vm117, -3.4028235e+38
      %135 = vst.msk [vmem:[#allocation2 + $0x80] sm:$0xff] %vm117, -3.4028235e+38
      %136 = vst.msk [vmem:[#allocation2 + $0x88] sm:$0x3] %vm120, -3.4028235e+38
      %137 = vst.msk [vmem:[#allocation2 + $0x90] sm:$0xff] %vm117, -3.4028235e+38
      %138 = vst.msk [vmem:[#allocation2 + $0x98] sm:$0xff] %vm117, -3.4028235e+38
      %139 = vst.msk [vmem:[#allocation2 + $0xa0] sm:$0x3] %vm120, -3.4028235e+38
      %140 = vst.msk [vmem:[#allocation2 + $0xa8] sm:$0xff] %vm117, -3.4028235e+38
      %141 = vst.msk [vmem:[#allocation2 + $0xb0] sm:$0xff] %vm117, -3.4028235e+38
      %142 = vst.msk [vmem:[#allocation2 + $0xb8] sm:$0x3] %vm120, -3.4028235e+38
      %143 = vst.msk [vmem:[#allocation2 + $0xc0] sm:$0xff] %vm117, -3.4028235e+38
      %144 = vst.msk [vmem:[#allocation2 + $0xc8] sm:$0xff] %vm117, -3.4028235e+38
      %145 = vst.msk [vmem:[#allocation2 + $0xd0] sm:$0x3] %vm120, -3.4028235e+38
      %146 = vst.msk [vmem:[#allocation2 + $0xd8] sm:$0xff] %vm117, -3.4028235e+38
      %147 = vst.msk [vmem:[#allocation2 + $0xe0] sm:$0xff] %vm117, -3.4028235e+38
      %148 = vst.msk [vmem:[#allocation2 + $0xe8] sm:$0x3] %vm120, -3.4028235e+38
      %149 = vst.msk [vmem:[#allocation2 + $0xf0] sm:$0xff] %vm117, -3.4028235e+38
      %150 = vst.msk [vmem:[#allocation2 + $0xf8] sm:$0xff] %vm117, -3.4028235e+38
      %151 = vst.msk [vmem:[#allocation2 + $0x100] sm:$0x3] %vm120, -3.4028235e+38
      %152 = vst.msk [vmem:[#allocation2 + $0x108] sm:$0xff] %vm117, -3.4028235e+38
      %153 = vst.msk [vmem:[#allocation2 + $0x110] sm:$0xff] %vm117, -3.4028235e+38
      %154 = vst.msk [vmem:[#allocation2 + $0x118] sm:$0x3] %vm120, -3.4028235e+38
      %155 = vst.msk [vmem:[#allocation2 + $0x120] sm:$0xff] %vm117, -3.4028235e+38
      %156 = vst.msk [vmem:[#allocation2 + $0x128] sm:$0xff] %vm117, -3.4028235e+38
      %157 = vst.msk [vmem:[#allocation2 + $0x130] sm:$0x3] %vm120, -3.4028235e+38
      %158 = vst.msk [vmem:[#allocation2 + $0x138] sm:$0xff] %vm117, -3.4028235e+38
      %159 = vst.msk [vmem:[#allocation2 + $0x140] sm:$0xff] %vm117, -3.4028235e+38
      %160 = vst.msk [vmem:[#allocation2 + $0x148] sm:$0x3] %vm120, -3.4028235e+38
      %161 = vst.msk [vmem:[#allocation2 + $0x150] sm:$0xff] %vm117, -3.4028235e+38
      %162 = vst.msk [vmem:[#allocation2 + $0x158] sm:$0xff] %vm117, -3.4028235e+38
      %163 = vst.msk [vmem:[#allocation2 + $0x160] sm:$0x3] %vm120, -3.4028235e+38
      %164 = vst.msk [vmem:[#allocation2 + $0x168] sm:$0xff] %vm117, -3.4028235e+38
      %165 = vst.msk [vmem:[#allocation2 + $0x170] sm:$0xff] %vm117, -3.4028235e+38
      %166 = vst.msk [vmem:[#allocation2 + $0x178] sm:$0x3] %vm120, -3.4028235e+38
      %167 = vst.msk [vmem:[#allocation2 + $0x180] sm:$0xff] %vm117, -3.4028235e+38
      %168 = vst.msk [vmem:[#allocation2 + $0x188] sm:$0xff] %vm117, -3.4028235e+38
      %169 = vst.msk [vmem:[#allocation2 + $0x190] sm:$0x3] %vm120, -3.4028235e+38
      %170 = vst.msk [vmem:[#allocation2 + $0x198] sm:$0xff] %vm117, -3.4028235e+38
      %171 = vst.msk [vmem:[#allocation2 + $0x1a0] sm:$0xff] %vm117, -3.4028235e+38
      %172 = vst.msk [vmem:[#allocation2 + $0x1a8] sm:$0x3] %vm120, -3.4028235e+38
      %v173 = vld [vmem:[%s111] sm:$0xff]
      %v174 = vld [vmem:[%s111 + $0x8] sm:$0xff]
      %v175 = vld [vmem:[%s111 + $0x10] sm:$0xff]
      %v176 = vld [vmem:[%s111 + $0x18] sm:$0xff]
      %v177 = vld [vmem:[%s111 + $0x20] sm:$0xff]
      %v178 = vld [vmem:[%s111 + $0x28] sm:$0xff]
      %v179 = vld [vmem:[%s111 + $0x30] sm:$0xff]
      %v180 = vld [vmem:[%s111 + $0x38] sm:$0xff]
      %v181 = vld [vmem:[%s111 + $0x40] sm:$0xff]
      %v182 = vld [vmem:[%s111 + $0x48] sm:$0xff]
      %v183 = vld [vmem:[%s111 + $0x50] sm:$0xff]
      %v184 = vld [vmem:[%s111 + $0x58] sm:$0xff]
      %v185 = vld [vmem:[%s111 + $0x60] sm:$0xff]
      %v186 = vld [vmem:[%s111 + $0x68] sm:$0xff]
      %v187 = vld [vmem:[%s111 + $0x70] sm:$0xff]
      %v188 = vld [vmem:[%s111 + $0x78] sm:$0xff]
      %v189 = vld [vmem:[%s111 + $0x80] sm:$0xff]
      %v190 = vld [vmem:[%s111 + $0x88] sm:$0xff]
      %v191 = vld [vmem:[%s111 + $0x90] sm:$0xff]
      %v192 = vld [vmem:[%s111 + $0x98] sm:$0xff]
      %v193 = vld [vmem:[%s111 + $0xa0] sm:$0xff]
      %v194 = vld [vmem:[%s111 + $0xa8] sm:$0xff]
      %v195 = vld [vmem:[%s111 + $0xb0] sm:$0xff]
      %v196 = vld [vmem:[%s111 + $0xb8] sm:$0xff]
      %v197 = vld [vmem:[%s111 + $0xc0] sm:$0xff]
      %v198 = vld [vmem:[%s111 + $0xc8] sm:$0xff]
      %v199 = vld [vmem:[%s111 + $0xd0] sm:$0xff]
      %v200 = vld [vmem:[%s111 + $0xd8] sm:$0xff]
      %v201 = vld [vmem:[%s111 + $0xe0] sm:$0xff]
      %v202 = vld [vmem:[%s111 + $0xe8] sm:$0xff]
      %v203 = vld [vmem:[%s111 + $0xf0] sm:$0xff]
      %v204 = vld [vmem:[%s111 + $0xf8] sm:$0xff]
      %s205 = scalar_lea.vmem [#allocation2], 24
      %206 = vst.msk [vmem:[%s205 + $0x1] sm:$0xff] %vm117, %v173
      %207 = vst.msk [vmem:[%s205 + $0x9] sm:$0xff] %vm117, %v174
      %208 = vst.msk [vmem:[%s205 + $0x19] sm:$0xff] %vm117, %v175
      %209 = vst.msk [vmem:[%s205 + $0x21] sm:$0xff] %vm117, %v176
      %210 = vst.msk [vmem:[%s205 + $0x31] sm:$0xff] %vm117, %v177
      %211 = vst.msk [vmem:[%s205 + $0x39] sm:$0xff] %vm117, %v178
      %212 = vst.msk [vmem:[%s205 + $0x49] sm:$0xff] %vm117, %v179
      %213 = vst.msk [vmem:[%s205 + $0x51] sm:$0xff] %vm117, %v180
      %214 = vst.msk [vmem:[%s205 + $0x61] sm:$0xff] %vm117, %v181
      %215 = vst.msk [vmem:[%s205 + $0x69] sm:$0xff] %vm117, %v182
      %216 = vst.msk [vmem:[%s205 + $0x79] sm:$0xff] %vm117, %v183
      %217 = vst.msk [vmem:[%s205 + $0x81] sm:$0xff] %vm117, %v184
      %218 = vst.msk [vmem:[%s205 + $0x91] sm:$0xff] %vm117, %v185
      %219 = vst.msk [vmem:[%s205 + $0x99] sm:$0xff] %vm117, %v186
      %220 = vst.msk [vmem:[%s205 + $0xa9] sm:$0xff] %vm117, %v187
      %221 = vst.msk [vmem:[%s205 + $0xb1] sm:$0xff] %vm117, %v188
      %222 = vst.msk [vmem:[%s205 + $0xc1] sm:$0xff] %vm117, %v189
      %223 = vst.msk [vmem:[%s205 + $0xc9] sm:$0xff] %vm117, %v190
      %224 = vst.msk [vmem:[%s205 + $0xd9] sm:$0xff] %vm117, %v191
      %225 = vst.msk [vmem:[%s205 + $0xe1] sm:$0xff] %vm117, %v192
      %226 = vst.msk [vmem:[%s205 + $0xf1] sm:$0xff] %vm117, %v193
      %227 = vst.msk [vmem:[%s205 + $0xf9] sm:$0xff] %vm117, %v194
      %228 = vst.msk [vmem:[%s205 + $0x109] sm:$0xff] %vm117, %v195
      %229 = vst.msk [vmem:[%s205 + $0x111] sm:$0xff] %vm117, %v196
      %230 = vst.msk [vmem:[%s205 + $0x121] sm:$0xff] %vm117, %v197
      %231 = vst.msk [vmem:[%s205 + $0x129] sm:$0xff] %vm117, %v198
      %232 = vst.msk [vmem:[%s205 + $0x139] sm:$0xff] %vm117, %v199
      %233 = vst.msk [vmem:[%s205 + $0x141] sm:$0xff] %vm117, %v200
      %234 = vst.msk [vmem:[%s205 + $0x151] sm:$0xff] %vm117, %v201
      %235 = vst.msk [vmem:[%s205 + $0x159] sm:$0xff] %vm117, %v202
      %236 = vst.msk [vmem:[%s205 + $0x169] sm:$0xff] %vm117, %v203
      %237 = vst.msk [vmem:[%s205 + $0x171] sm:$0xff] %vm117, %v204
      %v238 = vld [vmem:[#allocation2] sm:$0xff]
      %v239 = vld [vmem:[#allocation2 + $0x8] sm:$0xff]
      %v240 = vld [vmem:[#allocation2 + $0x10] sm:$0x3]
      %v241 = vld [vmem:[#allocation2 + $0x18] sm:$0xff]
      %v242 = vld [vmem:[#allocation2 + $0x20] sm:$0xff]
      %v243 = vld [vmem:[#allocation2 + $0x28] sm:$0x3]
      %v244 = vld [vmem:[#allocation2 + $0x30] sm:$0xff]
      %v245 = vld [vmem:[#allocation2 + $0x38] sm:$0xff]
      %v246 = vld [vmem:[#allocation2 + $0x40] sm:$0x3]
      %v247 = vld [vmem:[#allocation2 + $0x48] sm:$0xff]
      %v248 = vld [vmem:[#allocation2 + $0x50] sm:$0xff]
      %v249 = vld [vmem:[#allocation2 + $0x58] sm:$0x3]
      %v250 = vld [vmem:[#allocation2 + $0x60] sm:$0xff]
      %v251 = vld [vmem:[#allocation2 + $0x68] sm:$0xff]
      %v252 = vld [vmem:[#allocation2 + $0x70] sm:$0x3]
      %v253 = vld [vmem:[#allocation2 + $0x78] sm:$0xff]
      %v254 = vld [vmem:[#allocation2 + $0x80] sm:$0xff]
      %v255 = vld [vmem:[#allocation2 + $0x88] sm:$0x3]
      %v256 = vld [vmem:[#allocation2 + $0x90] sm:$0xff]
      %v257 = vld [vmem:[#allocation2 + $0x98] sm:$0xff]
      %v258 = vld [vmem:[#allocation2 + $0xa0] sm:$0x3]
      %v259 = vld [vmem:[#allocation2 + $0xa8] sm:$0xff]
      %v260 = vld [vmem:[#allocation2 + $0xb0] sm:$0xff]
      %v261 = vld [vmem:[#allocation2 + $0xb8] sm:$0x3]
      %v262 = vld [vmem:[#allocation2 + $0xc0] sm:$0xff]
      %v263 = vld [vmem:[#allocation2 + $0xc8] sm:$0xff]
      %v264 = vld [vmem:[#allocation2 + $0xd0] sm:$0x3]
      %v265 = vld [vmem:[#allocation2 + $0xd8] sm:$0xff]
      %v266 = vld [vmem:[#allocation2 + $0xe0] sm:$0xff]
      %v267 = vld [vmem:[#allocation2 + $0xe8] sm:$0x3]
      %v268 = vld [vmem:[#allocation2 + $0xf0] sm:$0xff]
      %v269 = vld [vmem:[#allocation2 + $0xf8] sm:$0xff]
      %v270 = vld [vmem:[#allocation2 + $0x100] sm:$0x3]
      %v271 = vld [vmem:[#allocation2 + $0x108] sm:$0xff]
      %v272 = vld [vmem:[#allocation2 + $0x110] sm:$0xff]
      %v273 = vld [vmem:[#allocation2 + $0x118] sm:$0x3]
      %v274 = vld [vmem:[#allocation2 + $0x120] sm:$0xff]
      %v275 = vld [vmem:[#allocation2 + $0x128] sm:$0xff]
      %v276 = vld [vmem:[#allocation2 + $0x130] sm:$0x3]
      %v277 = vld [vmem:[#allocation2 + $0x138] sm:$0xff]
      %v278 = vld [vmem:[#allocation2 + $0x140] sm:$0xff]
      %v279 = vld [vmem:[#allocation2 + $0x148] sm:$0x3]
      %v280 = vld [vmem:[#allocation2 + $0x150] sm:$0xff]
      %v281 = vld [vmem:[#allocation2 + $0x158] sm:$0xff]
      %v282 = vld [vmem:[#allocation2 + $0x160] sm:$0x3]
      %v283 = vld [vmem:[#allocation2 + $0x168] sm:$0xff]
      %v284 = vld [vmem:[#allocation2 + $0x170] sm:$0xff]
      %v285 = vld [vmem:[#allocation2 + $0x178] sm:$0x3]
      %v286 = vld [vmem:[#allocation2 + $0x180] sm:$0xff]
      %v287 = vld [vmem:[#allocation2 + $0x188] sm:$0xff]
      %v288 = vld [vmem:[#allocation2 + $0x190] sm:$0x3]
      %v289 = vld [vmem:[#allocation2 + $0x198] sm:$0xff]
      %v290 = vld [vmem:[#allocation2 + $0x1a0] sm:$0xff]
      %v291 = vld [vmem:[#allocation2 + $0x1a8] sm:$0x3]
      %vm340 = vcmask 1046528
      %v341 = vrot.slane %v238, 1
      %v342 = vrot.slane %v239, 1
      %v343 = vsel %vm340, %v341, %v342
      %v344 = vrot.slane %v240, 1
      %v345 = vsel %vm340, %v342, %v344
      %v346 = vrot.slane %v241, 1
      %v347 = vrot.slane %v242, 1
      %v348 = vsel %vm340, %v346, %v347
      %v349 = vrot.slane %v243, 1
      %v350 = vsel %vm340, %v347, %v349
      %v351 = vrot.slane %v244, 1
      %v352 = vrot.slane %v245, 1
      %v353 = vsel %vm340, %v351, %v352
      %v354 = vrot.slane %v246, 1
      %v355 = vsel %vm340, %v352, %v354
      %v356 = vrot.slane %v247, 1
      %v357 = vrot.slane %v248, 1
      %v358 = vsel %vm340, %v356, %v357
      %v359 = vrot.slane %v249, 1
      %v360 = vsel %vm340, %v357, %v359
      %v361 = vrot.slane %v250, 1
      %v362 = vrot.slane %v251, 1
      %v363 = vsel %vm340, %v361, %v362
      %v364 = vrot.slane %v252, 1
      %v365 = vsel %vm340, %v362, %v364
      %v366 = vrot.slane %v253, 1
      %v367 = vrot.slane %v254, 1
      %v368 = vsel %vm340, %v366, %v367
      %v369 = vrot.slane %v255, 1
      %v370 = vsel %vm340, %v367, %v369
      %v371 = vrot.slane %v256, 1
      %v372 = vrot.slane %v257, 1
      %v373 = vsel %vm340, %v371, %v372
      %v374 = vrot.slane %v258, 1
      %v375 = vsel %vm340, %v372, %v374
      %v376 = vrot.slane %v259, 1
      %v377 = vrot.slane %v260, 1
      %v378 = vsel %vm340, %v376, %v377
      %v379 = vrot.slane %v261, 1
      %v380 = vsel %vm340, %v377, %v379
      %v381 = vrot.slane %v262, 1
      %v382 = vrot.slane %v263, 1
      %v383 = vsel %vm340, %v381, %v382
      %v384 = vrot.slane %v264, 1
      %v385 = vsel %vm340, %v382, %v384
      %v386 = vrot.slane %v265, 1
      %v387 = vrot.slane %v266, 1
      %v388 = vsel %vm340, %v386, %v387
      %v389 = vrot.slane %v267, 1
      %v390 = vsel %vm340, %v387, %v389
      %v391 = vrot.slane %v268, 1
      %v392 = vrot.slane %v269, 1
      %v393 = vsel %vm340, %v391, %v392
      %v394 = vrot.slane %v270, 1
      %v395 = vsel %vm340, %v392, %v394
      %v396 = vrot.slane %v271, 1
      %v397 = vrot.slane %v272, 1
      %v398 = vsel %vm340, %v396, %v397
      %v399 = vrot.slane %v273, 1
      %v400 = vsel %vm340, %v397, %v399
      %v401 = vrot.slane %v274, 1
      %v402 = vrot.slane %v275, 1
      %v403 = vsel %vm340, %v401, %v402
      %v404 = vrot.slane %v276, 1
      %v405 = vsel %vm340, %v402, %v404
      %v406 = vrot.slane %v277, 1
      %v407 = vrot.slane %v278, 1
      %v408 = vsel %vm340, %v406, %v407
      %v409 = vrot.slane %v279, 1
      %v410 = vsel %vm340, %v407, %v409
      %v411 = vrot.slane %v280, 1
      %v412 = vrot.slane %v281, 1
      %v413 = vsel %vm340, %v411, %v412
      %v414 = vrot.slane %v282, 1
      %v415 = vsel %vm340, %v412, %v414
      %v416 = vrot.slane %v283, 1
      %v417 = vrot.slane %v284, 1
      %v418 = vsel %vm340, %v416, %v417
      %v419 = vrot.slane %v285, 1
      %v420 = vsel %vm340, %v417, %v419
      %v453 = vmax.f32 %v238, %v343
      %v454 = vmax.f32 %v239, %v345
      %v455 = vmax.f32 %v241, %v348
      %v456 = vmax.f32 %v242, %v350
      %v457 = vmax.f32 %v244, %v353
      %v458 = vmax.f32 %v245, %v355
      %v459 = vmax.f32 %v247, %v358
      %v460 = vmax.f32 %v248, %v360
      %v461 = vmax.f32 %v250, %v363
      %v462 = vmax.f32 %v251, %v365
      %v463 = vmax.f32 %v253, %v368
      %v464 = vmax.f32 %v254, %v370
      %v465 = vmax.f32 %v256, %v373
      %v466 = vmax.f32 %v257, %v375
      %v467 = vmax.f32 %v259, %v378
      %v468 = vmax.f32 %v260, %v380
      %v469 = vmax.f32 %v262, %v383
      %v470 = vmax.f32 %v263, %v385
      %v471 = vmax.f32 %v265, %v388
      %v472 = vmax.f32 %v266, %v390
      %v473 = vmax.f32 %v268, %v393
      %v474 = vmax.f32 %v269, %v395
      %v475 = vmax.f32 %v271, %v398
      %v476 = vmax.f32 %v272, %v400
      %v477 = vmax.f32 %v274, %v403
      %v478 = vmax.f32 %v275, %v405
      %v479 = vmax.f32 %v277, %v408
      %v480 = vmax.f32 %v278, %v410
      %v481 = vmax.f32 %v280, %v413
      %v482 = vmax.f32 %v281, %v415
      %v483 = vmax.f32 %v283, %v418
      %v484 = vmax.f32 %v284, %v420
      %vm485 = vcmask 1045504
      %v486 = vrot.slane %v238, 2
      %v487 = vrot.slane %v239, 2
      %v488 = vsel %vm485, %v486, %v487
      %v489 = vrot.slane %v240, 2
      %v490 = vsel %vm485, %v487, %v489
      %v491 = vrot.slane %v241, 2
      %v492 = vrot.slane %v242, 2
      %v493 = vsel %vm485, %v491, %v492
      %v494 = vrot.slane %v243, 2
      %v495 = vsel %vm485, %v492, %v494
      %v496 = vrot.slane %v244, 2
      %v497 = vrot.slane %v245, 2
      %v498 = vsel %vm485, %v496, %v497
      %v499 = vrot.slane %v246, 2
      %v500 = vsel %vm485, %v497, %v499
      %v501 = vrot.slane %v247, 2
      %v502 = vrot.slane %v248, 2
      %v503 = vsel %vm485, %v501, %v502
      %v504 = vrot.slane %v249, 2
      %v505 = vsel %vm485, %v502, %v504
      %v506 = vrot.slane %v250, 2
      %v507 = vrot.slane %v251, 2
      %v508 = vsel %vm485, %v506, %v507
      %v509 = vrot.slane %v252, 2
      %v510 = vsel %vm485, %v507, %v509
      %v511 = vrot.slane %v253, 2
      %v512 = vrot.slane %v254, 2
      %v513 = vsel %vm485, %v511, %v512
      %v514 = vrot.slane %v255, 2
      %v515 = vsel %vm485, %v512, %v514
      %v516 = vrot.slane %v256, 2
      %v517 = vrot.slane %v257, 2
      %v518 = vsel %vm485, %v516, %v517
      %v519 = vrot.slane %v258, 2
      %v520 = vsel %vm485, %v517, %v519
      %v521 = vrot.slane %v259, 2
      %v522 = vrot.slane %v260, 2
      %v523 = vsel %vm485, %v521, %v522
      %v524 = vrot.slane %v261, 2
      %v525 = vsel %vm485, %v522, %v524
      %v526 = vrot.slane %v262, 2
      %v527 = vrot.slane %v263, 2
      %v528 = vsel %vm485, %v526, %v527
      %v529 = vrot.slane %v264, 2
      %v530 = vsel %vm485, %v527, %v529
      %v531 = vrot.slane %v265, 2
      %v532 = vrot.slane %v266, 2
      %v533 = vsel %vm485, %v531, %v532
      %v534 = vrot.slane %v267, 2
      %v535 = vsel %vm485, %v532, %v534
      %v536 = vrot.slane %v268, 2
      %v537 = vrot.slane %v269, 2
      %v538 = vsel %vm485, %v536, %v537
      %v539 = vrot.slane %v270, 2
      %v540 = vsel %vm485, %v537, %v539
      %v541 = vrot.slane %v271, 2
      %v542 = vrot.slane %v272, 2
      %v543 = vsel %vm485, %v541, %v542
      %v544 = vrot.slane %v273, 2
      %v545 = vsel %vm485, %v542, %v544
      %v546 = vrot.slane %v274, 2
      %v547 = vrot.slane %v275, 2
      %v548 = vsel %vm485, %v546, %v547
      %v549 = vrot.slane %v276, 2
      %v550 = vsel %vm485, %v547, %v549
      %v551 = vrot.slane %v277, 2
      %v552 = vrot.slane %v278, 2
      %v553 = vsel %vm485, %v551, %v552
      %v554 = vrot.slane %v279, 2
      %v555 = vsel %vm485, %v552, %v554
      %v556 = vrot.slane %v280, 2
      %v557 = vrot.slane %v281, 2
      %v558 = vsel %vm485, %v556, %v557
      %v559 = vrot.slane %v282, 2
      %v560 = vsel %vm485, %v557, %v559
      %v561 = vrot.slane %v283, 2
      %v562 = vrot.slane %v284, 2
      %v563 = vsel %vm485, %v561, %v562
      %v564 = vrot.slane %v285, 2
      %v565 = vsel %vm485, %v562, %v564
      %v598 = vmax.f32 %v453, %v488
      %v599 = vmax.f32 %v454, %v490
      %v600 = vmax.f32 %v455, %v493
      %v601 = vmax.f32 %v456, %v495
      %v602 = vmax.f32 %v457, %v498
      %v603 = vmax.f32 %v458, %v500
      %v604 = vmax.f32 %v459, %v503
      %v605 = vmax.f32 %v460, %v505
      %v606 = vmax.f32 %v461, %v508
      %v607 = vmax.f32 %v462, %v510
      %v608 = vmax.f32 %v463, %v513
      %v609 = vmax.f32 %v464, %v515
      %v610 = vmax.f32 %v465, %v518
      %v611 = vmax.f32 %v466, %v520
      %v612 = vmax.f32 %v467, %v523
      %v613 = vmax.f32 %v468, %v525
      %v614 = vmax.f32 %v469, %v528
      %v615 = vmax.f32 %v470, %v530
      %v616 = vmax.f32 %v471, %v533
      %v617 = vmax.f32 %v472, %v535
      %v618 = vmax.f32 %v473, %v538
      %v619 = vmax.f32 %v474, %v540
      %v620 = vmax.f32 %v475, %v543
      %v621 = vmax.f32 %v476, %v545
      %v622 = vmax.f32 %v477, %v548
      %v623 = vmax.f32 %v478, %v550
      %v624 = vmax.f32 %v479, %v553
      %v625 = vmax.f32 %v480, %v555
      %v626 = vmax.f32 %v481, %v558
      %v627 = vmax.f32 %v482, %v560
      %v628 = vmax.f32 %v483, %v563
      %v629 = vmax.f32 %v484, %v565
      %v630 = vmax.f32 %v598, %v241
      %v631 = vmax.f32 %v599, %v242
      %v632 = vmax.f32 %v600, %v244
      %v633 = vmax.f32 %v601, %v245
      %v634 = vmax.f32 %v602, %v247
      %v635 = vmax.f32 %v603, %v248
      %v636 = vmax.f32 %v604, %v250
      %v637 = vmax.f32 %v605, %v251
      %v638 = vmax.f32 %v606, %v253
      %v639 = vmax.f32 %v607, %v254
      %v640 = vmax.f32 %v608, %v256
      %v641 = vmax.f32 %v609, %v257
      %v642 = vmax.f32 %v610, %v259
      %v643 = vmax.f32 %v611, %v260
      %v644 = vmax.f32 %v612, %v262
      %v645 = vmax.f32 %v613, %v263
      %v646 = vmax.f32 %v614, %v265
      %v647 = vmax.f32 %v615, %v266
      %v648 = vmax.f32 %v616, %v268
      %v649 = vmax.f32 %v617, %v269
      %v650 = vmax.f32 %v618, %v271
      %v651 = vmax.f32 %v619, %v272
      %v652 = vmax.f32 %v620, %v274
      %v653 = vmax.f32 %v621, %v275
      %v654 = vmax.f32 %v622, %v277
      %v655 = vmax.f32 %v623, %v278
      %v656 = vmax.f32 %v624, %v280
      %v657 = vmax.f32 %v625, %v281
      %v658 = vmax.f32 %v626, %v283
      %v659 = vmax.f32 %v627, %v284
      %v660 = vmax.f32 %v628, %v286
      %v661 = vmax.f32 %v629, %v287
      %v665 = vrot.slane %v286, 1
      %v666 = vrot.slane %v287, 1
      %v667 = vsel %vm340, %v665, %v666
      %v668 = vrot.slane %v288, 1
      %v669 = vsel %vm340, %v666, %v668
      %v672 = vmax.f32 %v630, %v348
      %v673 = vmax.f32 %v631, %v350
      %v674 = vmax.f32 %v632, %v353
      %v675 = vmax.f32 %v633, %v355
      %v676 = vmax.f32 %v634, %v358
      %v677 = vmax.f32 %v635, %v360
      %v678 = vmax.f32 %v636, %v363
      %v679 = vmax.f32 %v637, %v365
      %v680 = vmax.f32 %v638, %v368
      %v681 = vmax.f32 %v639, %v370
      %v682 = vmax.f32 %v640, %v373
      %v683 = vmax.f32 %v641, %v375
      %v684 = vmax.f32 %v642, %v378
      %v685 = vmax.f32 %v643, %v380
      %v686 = vmax.f32 %v644, %v383
      %v687 = vmax.f32 %v645, %v385
      %v688 = vmax.f32 %v646, %v388
      %v689 = vmax.f32 %v647, %v390
      %v690 = vmax.f32 %v648, %v393
      %v691 = vmax.f32 %v649, %v395
      %v692 = vmax.f32 %v650, %v398
      %v693 = vmax.f32 %v651, %v400
      %v694 = vmax.f32 %v652, %v403
      %v695 = vmax.f32 %v653, %v405
      %v696 = vmax.f32 %v654, %v408
      %v697 = vmax.f32 %v655, %v410
      %v698 = vmax.f32 %v656, %v413
      %v699 = vmax.f32 %v657, %v415
      %v700 = vmax.f32 %v658, %v418
      %v701 = vmax.f32 %v659, %v420
      %v702 = vmax.f32 %v660, %v667
      %v703 = vmax.f32 %v661, %v669
      %v704 = vrot.slane %v286, 2
      %v705 = vrot.slane %v287, 2
      %v706 = vsel %vm485, %v704, %v705
      %v707 = vrot.slane %v288, 2
      %v708 = vsel %vm485, %v705, %v707
      %v711 = vmax.f32 %v672, %v493
      %v712 = vmax.f32 %v673, %v495
      %v713 = vmax.f32 %v674, %v498
      %v714 = vmax.f32 %v675, %v500
      %v715 = vmax.f32 %v676, %v503
      %v716 = vmax.f32 %v677, %v505
      %v717 = vmax.f32 %v678, %v508
      %v718 = vmax.f32 %v679, %v510
      %v719 = vmax.f32 %v680, %v513
      %v720 = vmax.f32 %v681, %v515
      %v721 = vmax.f32 %v682, %v518
      %v722 = vmax.f32 %v683, %v520
      %v723 = vmax.f32 %v684, %v523
      %v724 = vmax.f32 %v685, %v525
      %v725 = vmax.f32 %v686, %v528
      %v726 = vmax.f32 %v687, %v530
      %v727 = vmax.f32 %v688, %v533
      %v728 = vmax.f32 %v689, %v535
      %v729 = vmax.f32 %v690, %v538
      %v730 = vmax.f32 %v691, %v540
      %v731 = vmax.f32 %v692, %v543
      %v732 = vmax.f32 %v693, %v545
      %v733 = vmax.f32 %v694, %v548
      %v734 = vmax.f32 %v695, %v550
      %v735 = vmax.f32 %v696, %v553
      %v736 = vmax.f32 %v697, %v555
      %v737 = vmax.f32 %v698, %v558
      %v738 = vmax.f32 %v699, %v560
      %v739 = vmax.f32 %v700, %v563
      %v740 = vmax.f32 %v701, %v565
      %v741 = vmax.f32 %v702, %v706
      %v742 = vmax.f32 %v703, %v708
      %v743 = vmax.f32 %v711, %v244
      %v744 = vmax.f32 %v712, %v245
      %v745 = vmax.f32 %v713, %v247
      %v746 = vmax.f32 %v714, %v248
      %v747 = vmax.f32 %v715, %v250
      %v748 = vmax.f32 %v716, %v251
      %v749 = vmax.f32 %v717, %v253
      %v750 = vmax.f32 %v718, %v254
      %v751 = vmax.f32 %v719, %v256
      %v752 = vmax.f32 %v720, %v257
      %v753 = vmax.f32 %v721, %v259
      %v754 = vmax.f32 %v722, %v260
      %v755 = vmax.f32 %v723, %v262
      %v756 = vmax.f32 %v724, %v263
      %v757 = vmax.f32 %v725, %v265
      %v758 = vmax.f32 %v726, %v266
      %v759 = vmax.f32 %v727, %v268
      %v760 = vmax.f32 %v728, %v269
      %v761 = vmax.f32 %v729, %v271
      %v762 = vmax.f32 %v730, %v272
      %v763 = vmax.f32 %v731, %v274
      %v764 = vmax.f32 %v732, %v275
      %v765 = vmax.f32 %v733, %v277
      %v766 = vmax.f32 %v734, %v278
      %v767 = vmax.f32 %v735, %v280
      %v768 = vmax.f32 %v736, %v281
      %v769 = vmax.f32 %v737, %v283
      %v770 = vmax.f32 %v738, %v284
      %v771 = vmax.f32 %v739, %v286
      %v772 = vmax.f32 %v740, %v287
      %v773 = vmax.f32 %v741, %v289
      %v774 = vmax.f32 %v742, %v290
      %v778 = vrot.slane %v289, 1
      %v779 = vrot.slane %v290, 1
      %v780 = vsel %vm340, %v778, %v779
      %v781 = vrot.slane %v291, 1
      %v782 = vsel %vm340, %v779, %v781
      %v785 = vmax.f32 %v743, %v353
      %v786 = vmax.f32 %v744, %v355
      %v787 = vmax.f32 %v745, %v358
      %v788 = vmax.f32 %v746, %v360
      %v789 = vmax.f32 %v747, %v363
      %v790 = vmax.f32 %v748, %v365
      %v791 = vmax.f32 %v749, %v368
      %v792 = vmax.f32 %v750, %v370
      %v793 = vmax.f32 %v751, %v373
      %v794 = vmax.f32 %v752, %v375
      %v795 = vmax.f32 %v753, %v378
      %v796 = vmax.f32 %v754, %v380
      %v797 = vmax.f32 %v755, %v383
      %v798 = vmax.f32 %v756, %v385
      %v799 = vmax.f32 %v757, %v388
      %v800 = vmax.f32 %v758, %v390
      %v801 = vmax.f32 %v759, %v393
      %v802 = vmax.f32 %v760, %v395
      %v803 = vmax.f32 %v761, %v398
      %v804 = vmax.f32 %v762, %v400
      %v805 = vmax.f32 %v763, %v403
      %v806 = vmax.f32 %v764, %v405
      %v807 = vmax.f32 %v765, %v408
      %v808 = vmax.f32 %v766, %v410
      %v809 = vmax.f32 %v767, %v413
      %v810 = vmax.f32 %v768, %v415
      %v811 = vmax.f32 %v769, %v418
      %v812 = vmax.f32 %v770, %v420
      %v813 = vmax.f32 %v771, %v667
      %v814 = vmax.f32 %v772, %v669
      %v815 = vmax.f32 %v773, %v780
      %v816 = vmax.f32 %v774, %v782
      %v817 = vrot.slane %v289, 2
      %v818 = vrot.slane %v290, 2
      %v819 = vsel %vm485, %v817, %v818
      %v820 = vrot.slane %v291, 2
      %v821 = vsel %vm485, %v818, %v820
      %v824 = vmax.f32 %v785, %v498
      %v825 = vmax.f32 %v786, %v500
      %v826 = vmax.f32 %v787, %v503
      %v827 = vmax.f32 %v788, %v505
      %v828 = vmax.f32 %v789, %v508
      %v829 = vmax.f32 %v790, %v510
      %v830 = vmax.f32 %v791, %v513
      %v831 = vmax.f32 %v792, %v515
      %v832 = vmax.f32 %v793, %v518
      %v833 = vmax.f32 %v794, %v520
      %v834 = vmax.f32 %v795, %v523
      %v835 = vmax.f32 %v796, %v525
      %v836 = vmax.f32 %v797, %v528
      %v837 = vmax.f32 %v798, %v530
      %v838 = vmax.f32 %v799, %v533
      %v839 = vmax.f32 %v800, %v535
      %v840 = vmax.f32 %v801, %v538
      %v841 = vmax.f32 %v802, %v540
      %v842 = vmax.f32 %v803, %v543
      %v843 = vmax.f32 %v804, %v545
      %v844 = vmax.f32 %v805, %v548
      %v845 = vmax.f32 %v806, %v550
      %v846 = vmax.f32 %v807, %v553
      %v847 = vmax.f32 %v808, %v555
      %v848 = vmax.f32 %v809, %v558
      %v849 = vmax.f32 %v810, %v560
      %v850 = vmax.f32 %v811, %v563
      %v851 = vmax.f32 %v812, %v565
      %v852 = vmax.f32 %v813, %v706
      %v853 = vmax.f32 %v814, %v708
      %v854 = vmax.f32 %v815, %v819
      %v855 = vmax.f32 %v816, %v821
      %856 = vst.msk [vmem:[%s116] sm:$0xff] %vm117, %v824
      %857 = vst.msk [vmem:[%s116 + $0x8] sm:$0xff] %vm117, %v825
      %858 = vst.msk [vmem:[%s116 + $0x10] sm:$0xff] %vm117, %v826
      %859 = vst.msk [vmem:[%s116 + $0x18] sm:$0xff] %vm117, %v827
      %860 = vst.msk [vmem:[%s116 + $0x20] sm:$0xff] %vm117, %v828
      %861 = vst.msk [vmem:[%s116 + $0x28] sm:$0xff] %vm117, %v829
      %862 = vst.msk [vmem:[%s116 + $0x30] sm:$0xff] %vm117, %v830
      %863 = vst.msk [vmem:[%s116 + $0x38] sm:$0xff] %vm117, %v831
      %864 = vst.msk [vmem:[%s116 + $0x40] sm:$0xff] %vm117, %v832
      %865 = vst.msk [vmem:[%s116 + $0x48] sm:$0xff] %vm117, %v833
      %866 = vst.msk [vmem:[%s116 + $0x50] sm:$0xff] %vm117, %v834
      %867 = vst.msk [vmem:[%s116 + $0x58] sm:$0xff] %vm117, %v835
      %868 = vst.msk [vmem:[%s116 + $0x60] sm:$0xff] %vm117, %v836
      %869 = vst.msk [vmem:[%s116 + $0x68] sm:$0xff] %vm117, %v837
      %870 = vst.msk [vmem:[%s116 + $0x70] sm:$0xff] %vm117, %v838
      %871 = vst.msk [vmem:[%s116 + $0x78] sm:$0xff] %vm117, %v839
      %872 = vst.msk [vmem:[%s116 + $0x80] sm:$0xff] %vm117, %v840
      %873 = vst.msk [vmem:[%s116 + $0x88] sm:$0xff] %vm117, %v841
      %874 = vst.msk [vmem:[%s116 + $0x90] sm:$0xff] %vm117, %v842
      %875 = vst.msk [vmem:[%s116 + $0x98] sm:$0xff] %vm117, %v843
      %876 = vst.msk [vmem:[%s116 + $0xa0] sm:$0xff] %vm117, %v844
      %877 = vst.msk [vmem:[%s116 + $0xa8] sm:$0xff] %vm117, %v845
      %878 = vst.msk [vmem:[%s116 + $0xb0] sm:$0xff] %vm117, %v846
      %879 = vst.msk [vmem:[%s116 + $0xb8] sm:$0xff] %vm117, %v847
      %880 = vst.msk [vmem:[%s116 + $0xc0] sm:$0xff] %vm117, %v848
      %881 = vst.msk [vmem:[%s116 + $0xc8] sm:$0xff] %vm117, %v849
      %882 = vst.msk [vmem:[%s116 + $0xd0] sm:$0xff] %vm117, %v850
      %883 = vst.msk [vmem:[%s116 + $0xd8] sm:$0xff] %vm117, %v851
      %884 = vst.msk [vmem:[%s116 + $0xe0] sm:$0xff] %vm117, %v852
      %885 = vst.msk [vmem:[%s116 + $0xe8] sm:$0xff] %vm117, %v853
      %886 = vst.msk [vmem:[%s116 + $0xf0] sm:$0xff] %vm117, %v854
      %887 = vst.msk [vmem:[%s116 + $0xf8] sm:$0xff] %vm117, %v855
      %p888 = scmp.lt.s32.totalorder %s12, 1
      %s889 = scalar_select %p888, %s12, 1
      %s890 = smul.addr %s889, 32
      %s891 = smul.addr %s890, 8
      %s892 = scalar_lea.vmem %s1, %s891
      // Predicated region
      $region25: #{tpu_custom_call.1} parent=23 // pred_check
        %p893 = pneg %p56
      $region26: #{tpu_custom_call.1} parent=23 // pred_check_branch
        %895 = sbr.rel (%p893) target = $region28
      $region27: #{tpu_custom_call.1} parent=23 // pred_region
        _
      $region28: #{tpu_custom_call.1} parent=23 // pred_fallthru
        _
    $region24: #{tpu_custom_call.1} parent=5 // pred_fallthru
      _
    %p896 = scmp.le.s32.totalorder 2, %s7
    // Predicated region
    $region29: #{tpu_custom_call.1} parent=5 // pred_check
      %p897 = pneg %p896
    $region30: #{tpu_custom_call.1} parent=5 // pred_check_branch
      %899 = sbr.rel (%p897) target = $region32
    $region31: #{tpu_custom_call.1} parent=5 // pred_region
      %s900 = ssub.s32 %s7, 2
      // Predicated region
      $region33: #{tpu_custom_call.1} parent=31 // pred_check
        %p901 = pneg %p62
      $region34: #{tpu_custom_call.1} parent=31 // pred_check_branch
        %903 = sbr.rel (%p901) target = $region36
      $region35: #{tpu_custom_call.1} parent=31 // pred_region
        %p904 = scmp.lt.s32.totalorder %s13, 1
        %s905 = scalar_select %p904, %s13, 1
        %s906 = smul.addr %s905, 32
        %s907 = smul.addr %s906, 8
        %s908 = scalar_lea.vmem %s1, %s907
      $region36: #{tpu_custom_call.1} parent=31 // pred_fallthru
        _
    $region32: #{tpu_custom_call.1} parent=5 // pred_fallthru
      _
  $region6: #{tpu_custom_call.1} parent=0 // loop_footer
    %s11 = sadd.s32 1, %s7
  $region7: #{tpu_custom_call.1} parent=0 // loop_footer_branch
    %6 = sbr.rel target = $region3
  $region8: #{tpu_custom_call.1} parent=0 // loop_exit
    _

</llo_original>
